<compile_context>
chip_gen: v6e
topology: v6e:2x2x1
jax: 0.10.0
libtpu: 0.0.40
codegen_flags: <defaults>
</compile_context>

<pallas_src>
import jax
import jax.numpy as jnp
from jax.experimental import pallas as pl
from jax.experimental.pallas import tpu as pltpu


def _round_up(x, m):
    return (x + m - 1) // m * m


def _decoder_kernel(y_ref, u_ref, e_ref, w_ref, o_ref):
    # y_ref: (TILE_M, 1) int32  flattened token ids for this tile (-1 => masked)
    # u_ref: (TILE_M, 1) int32  position within the U axis (same for every tile)
    # e_ref: (V, Dp)            embedding table (f32 or bf16), lane-padded
    # w_ref: (C, Dp)   f32      depthwise conv taps (transposed, lane-padded)
    # o_ref: (TILE_M, Dp) f32   output tile
    M = y_ref.shape[0]
    V, Dp = e_ref.shape
    C = w_ref.shape[0]

    ids = y_ref[...]                                   # (M, 1)
    u_pos = u_ref[...]                                 # (M, 1)
    idc = jnp.maximum(ids, 0)
    valid = ids >= 0

    # Embedding lookup as a single big one-hot matmul on the MXU.
    # Validity mask is folded into the one-hot (saves an (M, Dp) VPU multiply).
    col = jax.lax.broadcasted_iota(jnp.int32, (M, V), 1)
    onehot = jnp.where((idc == col) & valid, 1.0, 0.0).astype(e_ref.dtype)
    emb = jnp.dot(onehot, e_ref[...],
                  preferred_element_type=jnp.float32)  # (M, Dp) f32

    # Causal depthwise conv over U: tap k reads emb[u - k], weight w[:, C-1-k].
    # Shifts are XLU rolls along the sublane axis; (u_pos >= k) masks both the
    # causal left-pad and any cross-row wraparound.
    w = w_ref[...].astype(jnp.float32)                 # (C, Dp)
    acc = emb * w[C - 1][None, :]                      # tap k = 0 (no shift)
    for k in range(1, C):                              # C is static & small
        shifted = pltpu.roll(emb, k, axis=0)           # shifted[i] = emb[i - k]
        shifted = jnp.where(u_pos >= k, shifted, 0.0)
        acc = acc + shifted * w[C - 1 - k][None, :]

    # ReLU
    o_ref[...] = jnp.maximum(acc, 0.0)


def decoder_forward(y, emb_weight, conv_weight, *, tile_rows=None, target_rows=256):
    """Forward of the stateless Decoder (training path, need_pad=True).

    y:           (N, U) int token ids; negative ids give zero embeddings.
    emb_weight:  (V, D) table (ScaledEmbedding exp(scale) folded in); f32 or bf16.
    conv_weight: (D, C) depthwise causal conv weight (PyTorch (D,1,C) squeezed,
                 ScaledConv1d exp(weight_scale) folded in); C == context_size.
    returns:     (N, U, D) float32.
    target_rows: ~token positions per grid step (use 128 on v5e, 256 on v6e/v7x).
    """
    N, U = y.shape
    V, D = emb_weight.shape
    Dc, C = conv_weight.shape
    assert Dc == D and C >= 1

    # Lane-dense layout: pad D up to a multiple of 128 (unmasked stores).
    Dp = _round_up(D, 128)

    # Row tile: a multiple of 8 batch rows (sublane-aligned, U-aligned tiles).
    if tile_rows is None:
        tile_rows = max(1, target_rows // U)
    tile_rows = min(_round_up(tile_rows, 8), _round_up(N, 8))
    n_pad = _round_up(N, tile_rows)
    tile_m = tile_rows * U
    num_tiles = n_pad // tile_rows

    # Flattened ids; padded rows marked invalid (-1) so they produce zeros.
    y_flat = jnp.pad(y.astype(jnp.int32), ((0, n_pad - N), (0, 0)),
                     constant_values=-1).reshape(n_pad * U, 1)
    # Position inside U for every row of a tile (identical for all tiles).
    u_pos = jnp.tile(jnp.arange(U, dtype=jnp.int32), tile_rows).reshape(tile_m, 1)

    e_in = emb_weight
    if Dp != D:
        e_in = jnp.pad(e_in, ((0, 0), (0, Dp - D)))
    # Conv taps stored as (C, Dp) rows -> each tap is a lane-aligned row broadcast.
    w_in = jnp.pad(conv_weight.astype(jnp.float32).T, ((0, 0), (0, Dp - D)))

    out_flat = pl.pallas_call(
        _decoder_kernel,
        out_shape=jax.ShapeDtypeStruct((n_pad * U, Dp), jnp.float32),
        grid_spec=pltpu.PrefetchScalarGridSpec(
            num_scalar_prefetch=0,
            grid=(num_tiles,),
            in_specs=[
                pl.BlockSpec((tile_m, 1), lambda i: (i, 0)),   # token ids (per tile)
                pl.BlockSpec((tile_m, 1), lambda i: (0, 0)),   # u positions
                pl.BlockSpec((V, Dp), lambda i: (0, 0)),       # embedding table
                pl.BlockSpec((C, Dp), lambda i: (0, 0)),       # conv taps
            ],
            out_specs=pl.BlockSpec((tile_m, Dp), lambda i: (i, 0)),
        ),
        compiler_params=pltpu.CompilerParams(
            dimension_semantics=("parallel",)),                # megacore on v7x
    )(y_flat, u_pos, e_in, w_in)

    return out_flat.reshape(n_pad, U, Dp)[:N, :, :D]


def _reference(y, emb_weight, conv_weight):
    """Pure-JAX reference of the PyTorch forward (need_pad=True)."""
    N, U = y.shape
    C = conv_weight.shape[1]
    table = emb_weight.astype(jnp.float32)
    emb = table[jnp.maximum(y, 0)] * (y >= 0)[..., None].astype(jnp.float32)
    emb_pad = jnp.pad(emb, ((0, 0), (C - 1, 0), (0, 0)))
    out = jnp.zeros(emb.shape, jnp.float32)
    for k in range(C):
        out = out + emb_pad[:, k:k + U, :] * \
            conv_weight[:, k].astype(jnp.float32)[None, None, :]
    return jnp.maximum(out, 0.0)


if __name__ == "__main__":
    # Small, deterministic configuration consistent with the module.
    vocab_size = 16
    decoder_dim = 32
    blank_id = 0
    context_size = 2        # trigram -> depthwise conv with kernel_size=2
    N, U = 12, 8

    key = jax.random.PRNGKey(0)
    k_y, k_e, k_w, k_es, k_ws = jax.random.split(key, 5)

    # Token ids; include -1 values to exercise the (y >= 0) masking path.
    y = jax.random.randint(k_y, (N, U), minval=-1, maxval=vocab_size, dtype=jnp.int32)

    # ScaledEmbedding: fold exp(scale) into the table.
    emb_scale = jnp.exp(jax.random.normal(k_es, ()) * 0.1)
    emb_weight = (jax.random.normal(k_e, (vocab_size, decoder_dim), jnp.float32)
                  * (decoder_dim ** -0.5)) * emb_scale

    # ScaledConv1d (depthwise, bias=False): PyTorch weight (D, 1, C) -> (D, C),
    # with exp(weight_scale) folded in.
    conv_scale = jnp.exp(jax.random.normal(k_ws, ()) * 0.1)
    conv_weight = (jax.random.normal(k_w, (decoder_dim, context_size), jnp.float32)
                   * (context_size ** -0.5)) * conv_scale

    ref = _reference(y, emb_weight, conv_weight)

    # f32 table, small row tile to exercise a multi-step grid + padded rows.
    out = decoder_forward(y, emb_weight, conv_weight, tile_rows=8)
    out = jax.block_until_ready(out)
    assert out.shape == (N, U, decoder_dim)
    assert jnp.allclose(out, ref, atol=1e-5, rtol=1e-5), "f32 mismatch vs reference"

    # bf16 table (v6e/v7x MXU-friendly path), default tile size.
    out_bf16 = decoder_forward(y, emb_weight.astype(jnp.bfloat16), conv_weight)
    out_bf16 = jax.block_until_ready(out_bf16)
    ref_bf16 = _reference(y, emb_weight.astype(jnp.bfloat16), conv_weight)
    assert jnp.allclose(out_bf16, ref_bf16, atol=1e-4, rtol=1e-4), \
        "bf16 mismatch vs reference"

    print("KERNEL_OK")
</pallas_src>

<mosaic_0001>
module attributes {stable_mosaic.version = 11 : i64} {
  func.func @_decoder_kernel(%arg0: i32, %arg1: memref<64x1xi32, #tpu.memory_space<vmem>>, %arg2: memref<64x1xi32, #tpu.memory_space<vmem>>, %arg3: memref<16x128xf32, #tpu.memory_space<vmem>>, %arg4: memref<2x128xf32, #tpu.memory_space<vmem>>, %arg5: memref<64x128xf32, #tpu.memory_space<vmem>>) attributes {dimension_semantics = [#tpu.dimension_semantics<parallel>], iteration_bounds = array<i64: 2>, scalar_prefetch = 0 : i64, scratch_operands = 0 : i64, tpu.core_type = #tpu.core_type<tc>, window_params = [{transform_indices = @transform_0, window_bounds = array<i64: 64, 1>}, {pipeline_mode = #tpu.pipeline_mode<synchronous>, transform_indices = @transform_1, window_bounds = array<i64: 64, 1>}, {pipeline_mode = #tpu.pipeline_mode<synchronous>, transform_indices = @transform_2, window_bounds = array<i64: 16, 128>}, {pipeline_mode = #tpu.pipeline_mode<synchronous>, transform_indices = @transform_3, window_bounds = array<i64: 2, 128>}, {transform_indices = @transform_4, window_bounds = array<i64: 64, 128>}]} {
    %c0 = arith.constant 0 : index
    %c0_0 = arith.constant 0 : index
    %0 = vector.load %arg1[%c0, %c0_0] : memref<64x1xi32, #tpu.memory_space<vmem>>, vector<64x1xi32>
    %c0_1 = arith.constant 0 : index
    %c0_2 = arith.constant 0 : index
    %1 = vector.load %arg2[%c0_1, %c0_2] : memref<64x1xi32, #tpu.memory_space<vmem>>, vector<64x1xi32>
    %c0_i32 = arith.constant 0 : i32
    %2 = vector.broadcast %c0_i32 : i32 to vector<64x1xi32>
    %3 = arith.maxsi %0, %2 : vector<64x1xi32>
    %c0_i32_3 = arith.constant 0 : i32
    %4 = vector.broadcast %c0_i32_3 : i32 to vector<64x1xi32>
    %5 = arith.cmpi sge, %0, %4 : vector<64x1xi32>
    %6 = tpu.iota {dimensions = array<i32: 1>} : vector<64x16xi32>
    %7 = vector.broadcast %3 : vector<64x1xi32> to vector<64x16xi32>
    %8 = arith.cmpi eq, %7, %6 : vector<64x16xi32>
    %9 = vector.broadcast %5 : vector<64x1xi1> to vector<64x16xi1>
    %10 = arith.andi %8, %9 : vector<64x16xi1>
    %cst = arith.constant 1.000000e+00 : f32
    %cst_4 = arith.constant 0.000000e+00 : f32
    %11 = vector.broadcast %cst : f32 to vector<64x16xf32>
    %12 = vector.broadcast %cst_4 : f32 to vector<64x16xf32>
    %13 = arith.select %10, %11, %12 : vector<64x16xi1>, vector<64x16xf32>
    %c0_5 = arith.constant 0 : index
    %c0_6 = arith.constant 0 : index
    %14 = vector.load %arg3[%c0_5, %c0_6] : memref<16x128xf32, #tpu.memory_space<vmem>>, vector<16x128xf32>
    %cst_7 = arith.constant dense<0.000000e+00> : vector<64x128xf32>
    %15 = tpu.matmul %13, %14, %cst_7 {dimension_numbers = #tpu.dot_dimension_numbers<[1], [0], [0], [1], [0, 0, 1, 1], [], []>} : vector<64x16xf32>, vector<16x128xf32>, vector<64x128xf32> -> vector<64x128xf32>
    %c0_8 = arith.constant 0 : index
    %c0_9 = arith.constant 0 : index
    %16 = vector.load %arg4[%c0_8, %c0_9] : memref<2x128xf32, #tpu.memory_space<vmem>>, vector<2x128xf32>
    %17 = vector.extract_strided_slice %16 {offsets = [1, 0], sizes = [1, 128], strides = [1, 1]} : vector<2x128xf32> to vector<1x128xf32>
    %18 = vector.shape_cast %17 : vector<1x128xf32> to vector<128xf32>
    %19 = vector.shape_cast %18 : vector<128xf32> to vector<1x128xf32>
    %20 = vector.broadcast %19 : vector<1x128xf32> to vector<64x128xf32>
    %21 = arith.mulf %15, %20 : vector<64x128xf32>
    %c1_i32 = arith.constant 1 : i32
    %22 = tpu.dynamic_rotate %15 by %c1_i32 dim 0 : vector<64x128xf32>, i32 -> vector<64x128xf32>
    %c1_i32_10 = arith.constant 1 : i32
    %23 = vector.broadcast %c1_i32_10 : i32 to vector<64x1xi32>
    %24 = arith.cmpi sge, %1, %23 : vector<64x1xi32>
    %cst_11 = arith.constant 0.000000e+00 : f32
    %25 = vector.shape_cast %24 : vector<64x1xi1> to vector<64x1xi1>
    %26 = vector.broadcast %25 : vector<64x1xi1> to vector<64x128xi1>
    %27 = vector.broadcast %cst_11 : f32 to vector<64x128xf32>
    %28 = arith.select %26, %22, %27 : vector<64x128xi1>, vector<64x128xf32>
    %29 = vector.extract_strided_slice %16 {offsets = [0, 0], sizes = [1, 128], strides = [1, 1]} : vector<2x128xf32> to vector<1x128xf32>
    %30 = vector.shape_cast %29 : vector<1x128xf32> to vector<128xf32>
    %31 = vector.shape_cast %30 : vector<128xf32> to vector<1x128xf32>
    %32 = vector.broadcast %31 : vector<1x128xf32> to vector<64x128xf32>
    %33 = arith.mulf %28, %32 : vector<64x128xf32>
    %34 = arith.addf %21, %33 : vector<64x128xf32>
    %cst_12 = arith.constant 0.000000e+00 : f32
    %35 = vector.broadcast %cst_12 : f32 to vector<64x128xf32>
    %36 = arith.maximumf %34, %35 : vector<64x128xf32>
    %c0_13 = arith.constant 0 : index
    %c0_14 = arith.constant 0 : index
    %37 = vector.load %arg5[%c0_13, %c0_14] : memref<64x128xf32, #tpu.memory_space<vmem>>, vector<64x128xf32>
    tpu.vector_store %arg5[%c0_13, %c0_14], %36 {strides = array<i32>} : memref<64x128xf32, #tpu.memory_space<vmem>>, vector<64x128xf32>,
    return
  }
  func.func @transform_0(%arg0: i32) -> (i32, i32) {
    %c0_i32 = arith.constant 0 : i32
    %c0_i32_0 = arith.constant 0 : i32
    return %arg0, %c0_i32 : i32, i32
  }
  func.func @transform_1(%arg0: i32) -> (i32, i32) {
    %c0_i32 = arith.constant 0 : i32
    %c0_i32_0 = arith.constant 0 : i32
    %c0_i32_1 = arith.constant 0 : i32
    return %c0_i32, %c0_i32_0 : i32, i32
  }
  func.func @transform_2(%arg0: i32) -> (i32, i32) {
    %c0_i32 = arith.constant 0 : i32
    %c0_i32_0 = arith.constant 0 : i32
    %c0_i32_1 = arith.constant 0 : i32
    return %c0_i32, %c0_i32_0 : i32, i32
  }
  func.func @transform_3(%arg0: i32) -> (i32, i32) {
    %c0_i32 = arith.constant 0 : i32
    %c0_i32_0 = arith.constant 0 : i32
    %c0_i32_1 = arith.constant 0 : i32
    return %c0_i32, %c0_i32_0 : i32, i32
  }
  func.func @transform_4(%arg0: i32) -> (i32, i32) {
    %c0_i32 = arith.constant 0 : i32
    %c0_i32_0 = arith.constant 0 : i32
    return %arg0, %c0_i32 : i32, i32
  }
}

</mosaic_0001>

<llo_original>
// kernel: tpu_custom_call.1
$region0: #{tpu_custom_call.1}
  #allocation0 [shape = 'u32[]', space=smem, size = 0x4, offset = 0x4, fixed_abs, tag = 'smem constant byte address 0x4 - core index']
  #allocation1 [shape = 'u32[144,128]{1,0:T(1,128)}', space=vmem, size = 0x12000, scoped, tag = 'internal scratch']
  %s0 = inlined_call_operand.vmem [shape: s32[128,1], index: 0, kind: input, shape index: {}]
  %s1 = inlined_call_operand.vmem [shape: s32[64,1], index: 1, kind: input, shape index: {}]
  %s2 = inlined_call_operand.vmem [shape: f32[16,128], index: 2, kind: input, shape index: {}]
  %s3 = inlined_call_operand.vmem [shape: f32[2,128], index: 3, kind: input, shape index: {}]
  %s4 = inlined_call_operand.hbm [shape: f32[128,128], index: 4, kind: output, shape index: {}]
  %s5 = sld [smem:[#allocation0]]
  $region49: #{tpu_custom_call.1} parent=0
    _
  %s7 = ssub.s32 1, %s5
  %s8 = scalar_select 0, %s7, %s5
  $region1: #{tpu_custom_call.1} parent=0
    #allocation2 [shape = 'u8[65536]{0}', space=vmem, size = 0x10000, scoped, tag = 'output window, operand 0']
    #allocation3 [shape = 's32[2]{0}', space=sflag, size = 0x8, scoped, tag = 'scoped memory for tpu_custom_call.1']
    %9 = vsyncpa [#allocation3], 0
    %s10 = scalar_lea.sflag [#allocation3], 1
    %11 = vsyncpa %s10, 0
    loop: start=0, step=1, limit=4
    $region2: #{tpu_custom_call.1} parent=1 // loop_pre_header
      _
    $region3: #{tpu_custom_call.1} parent=1 // loop_header
      %s13 = sphi 0, %s17
      %p14 = scmp.ge.s32.totalorder %s13, 4
      %s23 = sphi 0, %s25
      %s26 = sphi 0, %s23
      %s27 = sphi 0, %s26
      %s43 = sphi 0, %s27
      %s47 = sphi 0, %s47
      %s49 = sphi 0, %s47
      %s50 = sphi 0, %s49
      %s64 = sphi 0, %s50
      %s68 = sphi 0, %s68
      %s70 = sphi 0, %s68
      %s71 = sphi 0, %s70
      %s85 = sphi 0, %s71
      %s89 = sphi 0, %s89
      %s91 = sphi 0, %s89
      %s92 = sphi 0, %s91
      %s106 = sphi 0, %s92
      %s112 = sphi 0, %s114
      %s115 = sphi 0, %s112
      %s116 = sphi 0, %s115
      %s132 = sphi 0, %s116
    $region4: #{tpu_custom_call.1} parent=1 // loop_header_branch
      %16 = sbr.rel (%p14) target = $region8
    $region5: #{tpu_custom_call.1} parent=1 // loop_body
      %s18 = ssub.s32 %s13, 1
      %s19 = ssub.s32 %s13, 2
      %s20 = sadd.s32 %s13, 1
      %s21 = ssub.s32 %s13, %s20
      %p22 = scmp.eq.s32.totalorder %s21, 0
      %s24 = sadd.s32 %s23, 1
      %s25 = scalar_select %p22, %s23, %s24
      %p28 = pneg %p22
      %p29 = scmp.eq.s32.totalorder %s13, 1
      %p30 = por %p28, %p29
      %p31 = scmp.ne.s32.totalorder %s23, %s26
      %p32 = scmp.eq.s32.totalorder %s13, 0
      %p33 = por %p31, %p32
      %p34 = scmp.ne.s32.totalorder %s23, %s26
      %p35 = scmp.eq.s32.totalorder %s18, 1
      %p36 = por %p34, %p35
      %p37 = scmp.ne.s32.totalorder %s26, %s27
      %p38 = scmp.eq.s32.totalorder %s18, 0
      %p39 = por %p37, %p38
      %p40 = scmp.ne.s32.totalorder %s26, %s27
      %p41 = scmp.eq.s32.totalorder %s19, 1
      %p42 = por %p40, %p41
      %p44 = scmp.ne.s32.totalorder %s27, %s43
      %p45 = scmp.eq.s32.totalorder %s19, 0
      %p46 = por %p44, %p45
      %s48 = sadd.s32 %s47, 1
      %p51 = scmp.eq.s32.totalorder %s13, 1
      %p52 = scmp.ne.s32.totalorder %s47, %s49
      %p53 = scmp.eq.s32.totalorder %s13, 0
      %p54 = por %p52, %p53
      %p55 = scmp.ne.s32.totalorder %s47, %s49
      %p56 = scmp.eq.s32.totalorder %s18, 1
      %p57 = por %p55, %p56
      %p58 = scmp.ne.s32.totalorder %s49, %s50
      %p59 = scmp.eq.s32.totalorder %s18, 0
      %p60 = por %p58, %p59
      %p61 = scmp.ne.s32.totalorder %s49, %s50
      %p62 = scmp.eq.s32.totalorder %s19, 1
      %p63 = por %p61, %p62
      %p65 = scmp.ne.s32.totalorder %s50, %s64
      %p66 = scmp.eq.s32.totalorder %s19, 0
      %p67 = por %p65, %p66
      %s69 = sadd.s32 %s68, 1
      %p72 = scmp.eq.s32.totalorder %s13, 1
      %p73 = scmp.ne.s32.totalorder %s68, %s70
      %p74 = scmp.eq.s32.totalorder %s13, 0
      %p75 = por %p73, %p74
      %p76 = scmp.ne.s32.totalorder %s68, %s70
      %p77 = scmp.eq.s32.totalorder %s18, 1
      %p78 = por %p76, %p77
      %p79 = scmp.ne.s32.totalorder %s70, %s71
      %p80 = scmp.eq.s32.totalorder %s18, 0
      %p81 = por %p79, %p80
      %p82 = scmp.ne.s32.totalorder %s70, %s71
      %p83 = scmp.eq.s32.totalorder %s19, 1
      %p84 = por %p82, %p83
      %p86 = scmp.ne.s32.totalorder %s71, %s85
      %p87 = scmp.eq.s32.totalorder %s19, 0
      %p88 = por %p86, %p87
      %s90 = sadd.s32 %s89, 1
      %p93 = scmp.eq.s32.totalorder %s13, 1
      %p94 = scmp.ne.s32.totalorder %s89, %s91
      %p95 = scmp.eq.s32.totalorder %s13, 0
      %p96 = por %p94, %p95
      %p97 = scmp.ne.s32.totalorder %s89, %s91
      %p98 = scmp.eq.s32.totalorder %s18, 1
      %p99 = por %p97, %p98
      %p100 = scmp.ne.s32.totalorder %s91, %s92
      %p101 = scmp.eq.s32.totalorder %s18, 0
      %p102 = por %p100, %p101
      %p103 = scmp.ne.s32.totalorder %s91, %s92
      %p104 = scmp.eq.s32.totalorder %s19, 1
      %p105 = por %p103, %p104
      %p107 = scmp.ne.s32.totalorder %s92, %s106
      %p108 = scmp.eq.s32.totalorder %s19, 0
      %p109 = por %p107, %p108
      %s110 = ssub.s32 %s13, %s20
      %p111 = scmp.eq.s32.totalorder %s110, 0
      %s113 = sadd.s32 %s112, 1
      %s114 = scalar_select %p111, %s112, %s113
      %p117 = pneg %p111
      %p118 = scmp.eq.s32.totalorder %s13, 1
      %p119 = por %p117, %p118
      %p120 = scmp.ne.s32.totalorder %s112, %s115
      %p121 = scmp.eq.s32.totalorder %s13, 0
      %p122 = por %p120, %p121
      %p123 = scmp.ne.s32.totalorder %s112, %s115
      %p124 = scmp.eq.s32.totalorder %s18, 1
      %p125 = por %p123, %p124
      %p126 = scmp.ne.s32.totalorder %s115, %s116
      %p127 = scmp.eq.s32.totalorder %s18, 0
      %p128 = por %p126, %p127
      %p129 = scmp.ne.s32.totalorder %s115, %s116
      %p130 = scmp.eq.s32.totalorder %s19, 1
      %p131 = por %p129, %p130
      %p133 = scmp.ne.s32.totalorder %s116, %s132
      %p134 = scmp.eq.s32.totalorder %s19, 0
      %p135 = por %p133, %p134
      %p136 = scmp.le.s32.totalorder 1, %s13
      %p137 = scmp.lt.s32.totalorder %s13, 3
      %p138 = pnand %p136, %p137
      %p139 = pneg %p138
      // Predicated region
      $region9: #{tpu_custom_call.1} parent=5 // pred_check
        _
      $region10: #{tpu_custom_call.1} parent=5 // pred_check_branch
        %141 = sbr.rel (%p138) target = $region12
      $region11: #{tpu_custom_call.1} parent=5 // pred_region
        %s142 = ssub.s32 %s13, 1
        // Predicated region
        $region13: #{tpu_custom_call.1} parent=11 // pred_check
          %p143 = pneg %p60
        $region14: #{tpu_custom_call.1} parent=11 // pred_check_branch
          %145 = sbr.rel (%p143) target = $region16
        $region15: #{tpu_custom_call.1} parent=11 // pred_region
          _
        $region16: #{tpu_custom_call.1} parent=11 // pred_fallthru
          _
        // Predicated region
        $region17: #{tpu_custom_call.1} parent=11 // pred_check
          %p146 = pneg %p81
        $region18: #{tpu_custom_call.1} parent=11 // pred_check_branch
          %148 = sbr.rel (%p146) target = $region20
        $region19: #{tpu_custom_call.1} parent=11 // pred_region
          _
        $region20: #{tpu_custom_call.1} parent=11 // pred_fallthru
          _
        // Predicated region
        $region21: #{tpu_custom_call.1} parent=11 // pred_check
          %p149 = pneg %p102
        $region22: #{tpu_custom_call.1} parent=11 // pred_check_branch
          %151 = sbr.rel (%p149) target = $region24
        $region23: #{tpu_custom_call.1} parent=11 // pred_region
          _
        $region24: #{tpu_custom_call.1} parent=11 // pred_fallthru
          _
      $region12: #{tpu_custom_call.1} parent=5 // pred_fallthru
        _
      %p152 = scmp.lt.s32.totalorder %s13, 2
      // Predicated region
      $region25: #{tpu_custom_call.1} parent=5 // pred_check
        %p153 = pneg %p152
      $region26: #{tpu_custom_call.1} parent=5 // pred_check_branch
        %155 = sbr.rel (%p153) target = $region28
      $region27: #{tpu_custom_call.1} parent=5 // pred_region
        // Predicated region
        $region29: #{tpu_custom_call.1} parent=27 // pred_check
          %p156 = pneg %p33
        $region30: #{tpu_custom_call.1} parent=27 // pred_check_branch
          %158 = sbr.rel (%p156) target = $region32
        $region31: #{tpu_custom_call.1} parent=27 // pred_region
          %s159 = smul.u32 8, %s13
          %p160 = scmp.lt.s32.totalorder %s159, 15
          %s161 = scalar_select %p160, %s159, 15
          %s162 = smul.addr %s161, 8
          %s163 = scalar_lea.vmem %s0, %s162
          %s164 = smul.u32 8, %s13
        $region32: #{tpu_custom_call.1} parent=27 // pred_fallthru
          _
      $region28: #{tpu_custom_call.1} parent=5 // pred_fallthru
        _
      %p165 = scmp.le.s32.totalorder 1, %s13
      %p166 = scmp.lt.s32.totalorder %s13, 3
      %p167 = pnand %p165, %p166
      %p168 = pneg %p167
      // Predicated region
      $region33: #{tpu_custom_call.1} parent=5 // pred_check
        _
      $region34: #{tpu_custom_call.1} parent=5 // pred_check_branch
        %170 = sbr.rel (%p167) target = $region36
      $region35: #{tpu_custom_call.1} parent=5 // pred_region
        %s171 = ssub.s32 %s13, 1
        %s172 = smul.u32 8, %s18
        %p173 = scmp.lt.s32.totalorder %s172, 15
        %s174 = scalar_select %p173, %s172, 15
        %s175 = smul.addr %s174, 8
        %s176 = scalar_lea.vmem %s0, %s175
        %p177 = pneg %p39
        %p178 = pneg %p36
        %p179 = pneg %p60
        %p180 = pneg %p57
        %p181 = pneg %p81
        %p182 = pneg %p78
        %p183 = pneg %p102
        %p184 = pneg %p99
        %p185 = pneg %p128
        %p186 = pneg %p125
        %s187 = sand.u32 %s115, 1
        %s188 = scalar_lea.sflag [#allocation3], %s187
        %s189 = sand.u32 %s115, 1
        %s190 = smul.addr %s189, 64
        %s191 = scalar_lea.vmem [#allocation2], %s190
        %s192 = smul.u32 8, %s18
        %p193 = scmp.lt.s32.totalorder %s192, 15
        %s194 = scalar_select %p193, %s192, 15
        %s195 = smul.addr %s194, 8
        %s196 = scalar_lea.vmem %s0, %s195
        %s197 = smul.u32 8, %s18
        %s198 = smul.u32 8, %s18
        %v199 = vld [vmem:[%s196] sm:$0xff]
        %v200 = vld [vmem:[%s196 + $0x8] sm:$0xff]
        %v201 = vld [vmem:[%s196 + $0x10] sm:$0xff]
        %v202 = vld [vmem:[%s196 + $0x18] sm:$0xff]
        %v203 = vld [vmem:[%s196 + $0x20] sm:$0xff]
        %v204 = vld [vmem:[%s196 + $0x28] sm:$0xff]
        %v205 = vld [vmem:[%s196 + $0x30] sm:$0xff]
        %v206 = vld [vmem:[%s196 + $0x38] sm:$0xff]
        %v207 = vld [vmem:[%s1] sm:$0xff]
        %v208 = vld [vmem:[%s1 + $0x8] sm:$0xff]
        %v209 = vld [vmem:[%s1 + $0x10] sm:$0xff]
        %v210 = vld [vmem:[%s1 + $0x18] sm:$0xff]
        %v211 = vld [vmem:[%s1 + $0x20] sm:$0xff]
        %v212 = vld [vmem:[%s1 + $0x28] sm:$0xff]
        %v213 = vld [vmem:[%s1 + $0x30] sm:$0xff]
        %v214 = vld [vmem:[%s1 + $0x38] sm:$0xff]
        %vm215 = vcmp.gt.s32.totalorder %v199, 0
        %v216 = vsel %vm215, %v199, 0
        %vm217 = vcmp.gt.s32.totalorder %v200, 0
        %v218 = vsel %vm217, %v200, 0
        %vm219 = vcmp.gt.s32.totalorder %v201, 0
        %v220 = vsel %vm219, %v201, 0
        %vm221 = vcmp.gt.s32.totalorder %v202, 0
        %v222 = vsel %vm221, %v202, 0
        %vm223 = vcmp.gt.s32.totalorder %v203, 0
        %v224 = vsel %vm223, %v203, 0
        %vm225 = vcmp.gt.s32.totalorder %v204, 0
        %v226 = vsel %vm225, %v204, 0
        %vm227 = vcmp.gt.s32.totalorder %v205, 0
        %v228 = vsel %vm227, %v205, 0
        %vm229 = vcmp.gt.s32.totalorder %v206, 0
        %v230 = vsel %vm229, %v206, 0
        %vm231 = vcmp.ge.s32.totalorder %v199, 0
        %vm232 = vcmp.ge.s32.totalorder %v200, 0
        %vm233 = vcmp.ge.s32.totalorder %v201, 0
        %vm234 = vcmp.ge.s32.totalorder %v202, 0
        %vm235 = vcmp.ge.s32.totalorder %v203, 0
        %vm236 = vcmp.ge.s32.totalorder %v204, 0
        %vm237 = vcmp.ge.s32.totalorder %v205, 0
        %vm238 = vcmp.ge.s32.totalorder %v206, 0
        %v239 = vlaneseq
        %v240 = vand.u32 %v239, 127
        %241 = vset.pattern.permute.xlu0 0
        %242 = vperm.xlu0 %241, %v216
        %v243 = vpop.permute.xlu0 %242
        %244 = vset.pattern.permute.xlu0 0
        %245 = vperm.xlu0 %244, %v218
        %v246 = vpop.permute.xlu0 %245
        %247 = vset.pattern.permute.xlu0 0
        %248 = vperm.xlu0 %247, %v220
        %v249 = vpop.permute.xlu0 %248
        %250 = vset.pattern.permute.xlu0 0
        %251 = vperm.xlu0 %250, %v222
        %v252 = vpop.permute.xlu0 %251
        %253 = vset.pattern.permute.xlu0 0
        %254 = vperm.xlu0 %253, %v224
        %v255 = vpop.permute.xlu0 %254
        %256 = vset.pattern.permute.xlu0 0
        %257 = vperm.xlu0 %256, %v226
        %v258 = vpop.permute.xlu0 %257
        %259 = vset.pattern.permute.xlu0 0
        %260 = vperm.xlu0 %259, %v228
        %v261 = vpop.permute.xlu0 %260
        %262 = vset.pattern.permute.xlu0 0
        %263 = vperm.xlu0 %262, %v230
        %v264 = vpop.permute.xlu0 %263
        %vm265 = vcmp.eq.s32.totalorder %v243, %v240
        %vm266 = vcmp.eq.s32.totalorder %v246, %v240
        %vm267 = vcmp.eq.s32.totalorder %v249, %v240
        %vm268 = vcmp.eq.s32.totalorder %v252, %v240
        %vm269 = vcmp.eq.s32.totalorder %v255, %v240
        %vm270 = vcmp.eq.s32.totalorder %v258, %v240
        %vm271 = vcmp.eq.s32.totalorder %v261, %v240
        %vm272 = vcmp.eq.s32.totalorder %v264, %v240
        %v273 = vsel %vm231, 1, 0
        %v274 = vsel %vm232, 1, 0
        %v275 = vsel %vm233, 1, 0
        %v276 = vsel %vm234, 1, 0
        %v277 = vsel %vm235, 1, 0
        %v278 = vsel %vm236, 1, 0
        %v279 = vsel %vm237, 1, 0
        %v280 = vsel %vm238, 1, 0
        %281 = vset.pattern.permute.xlu0 0
        %282 = vperm.xlu0 %281, %v273
        %v283 = vpop.permute.xlu0 %282
        %284 = vset.pattern.permute.xlu0 0
        %285 = vperm.xlu0 %284, %v274
        %v286 = vpop.permute.xlu0 %285
        %287 = vset.pattern.permute.xlu0 0
        %288 = vperm.xlu0 %287, %v275
        %v289 = vpop.permute.xlu0 %288
        %290 = vset.pattern.permute.xlu0 0
        %291 = vperm.xlu0 %290, %v276
        %v292 = vpop.permute.xlu0 %291
        %293 = vset.pattern.permute.xlu0 0
        %294 = vperm.xlu0 %293, %v277
        %v295 = vpop.permute.xlu0 %294
        %296 = vset.pattern.permute.xlu0 0
        %297 = vperm.xlu0 %296, %v278
        %v298 = vpop.permute.xlu0 %297
        %299 = vset.pattern.permute.xlu0 0
        %300 = vperm.xlu0 %299, %v279
        %v301 = vpop.permute.xlu0 %300
        %302 = vset.pattern.permute.xlu0 0
        %303 = vperm.xlu0 %302, %v280
        %v304 = vpop.permute.xlu0 %303
        %vm305 = vcmp.eq.s32.totalorder %v283, 1
        %vm306 = vcmp.eq.s32.totalorder %v286, 1
        %vm307 = vcmp.eq.s32.totalorder %v289, 1
        %vm308 = vcmp.eq.s32.totalorder %v292, 1
        %vm309 = vcmp.eq.s32.totalorder %v295, 1
        %vm310 = vcmp.eq.s32.totalorder %v298, 1
        %vm311 = vcmp.eq.s32.totalorder %v301, 1
        %vm312 = vcmp.eq.s32.totalorder %v304, 1
        %vm313 = vmand %vm265, %vm305
        %vm314 = vmand %vm266, %vm306
        %vm315 = vmand %vm267, %vm307
        %vm316 = vmand %vm268, %vm308
        %vm317 = vmand %vm269, %vm309
        %vm318 = vmand %vm270, %vm310
        %vm319 = vmand %vm271, %vm311
        %vm320 = vmand %vm272, %vm312
        %v321 = vsel %vm313, 1.0, 0.0
        %v322 = vsel %vm314, 1.0, 0.0
        %v323 = vsel %vm315, 1.0, 0.0
        %v324 = vsel %vm316, 1.0, 0.0
        %v325 = vsel %vm317, 1.0, 0.0
        %v326 = vsel %vm318, 1.0, 0.0
        %v327 = vsel %vm319, 1.0, 0.0
        %v328 = vsel %vm320, 1.0, 0.0
        %v329 = vld [vmem:[%s2] sm:$0xff]
        %v330 = vld [vmem:[%s2 + $0x8] sm:$0xff]
        %vm331 = vcmask 130048
        %v333 = vsel %vm331, %v321, 0
        %v336 = vsel %vm331, %v322, 0
        %v339 = vsel %vm331, %v323, 0
        %v342 = vsel %vm331, %v324, 0
        %v345 = vsel %vm331, %v325, 0
        %v348 = vsel %vm331, %v326, 0
        %v351 = vsel %vm331, %v327, 0
        %v354 = vsel %vm331, %v328, 0
        %356 = vmatprep.subr.mxu0 0.0
        %357 = vmatpush1.msra.mxu0 0.0
        %358 = vmatprep.subr.mxu0 0.0
        %359 = vmatpush1.msra.mxu0 0.0
        %360 = vmatprep.subr.mxu0 0.0
        %361 = vmatpush1.msra.mxu0 0.0
        %362 = vmatprep.subr.mxu0 0.0
        %363 = vmatpush1.msra.mxu0 0.0
        %364 = vmatprep.subr.mxu0 0.0
        %365 = vmatpush1.msra.mxu0 0.0
        %366 = vmatprep.subr.mxu0 0.0
        %367 = vmatpush1.msra.mxu0 0.0
        %368 = vmatprep.subr.mxu0 0.0
        %369 = vmatpush1.msra.mxu0 0.0
        %370 = vmatprep.subr.mxu0 0.0
        %371 = vmatpush1.msra.mxu0 0.0
        %372 = vmatprep.subr.mxu0 0.0
        %373 = vmatpush1.msra.mxu0 0.0
        %374 = vmatprep.subr.mxu0 0.0
        %375 = vmatpush1.msra.mxu0 0.0
        %376 = vmatprep.subr.mxu0 0.0
        %377 = vmatpush1.msra.mxu0 0.0
        %378 = vmatprep.subr.mxu0 0.0
        %379 = vmatpush1.msra.mxu0 0.0
        %380 = vmatprep.subr.mxu0 0.0
        %381 = vmatpush1.msra.mxu0 0.0
        %382 = vmatprep.subr.mxu0 0.0
        %383 = vmatpush1.msra.mxu0 0.0
        %384 = vmatprep.subr.mxu0 0.0
        %385 = vmatpush1.msra.mxu0 %v330
        %386 = vmatprep.subr.mxu0 0.0
        %387 = vmatpush1.msra.mxu0 %v329
        %388 = vmatprep.subr.mxu0 0.0
        %389 = vmatpush2.msra.mxu0 0.0
        %390 = vmatprep.subr.mxu0 0.0
        %391 = vmatpush2.msra.mxu0 0.0
        %392 = vmatprep.subr.mxu0 0.0
        %393 = vmatpush2.msra.mxu0 0.0
        %394 = vmatprep.subr.mxu0 0.0
        %395 = vmatpush2.msra.mxu0 0.0
        %396 = vmatprep.subr.mxu0 0.0
        %397 = vmatpush2.msra.mxu0 0.0
        %398 = vmatprep.subr.mxu0 0.0
        %399 = vmatpush2.msra.mxu0 0.0
        %400 = vmatprep.subr.mxu0 0.0
        %401 = vmatpush2.msra.mxu0 0.0
        %402 = vmatprep.subr.mxu0 0.0
        %403 = vmatpush2.msra.mxu0 0.0
        %404 = vmatprep.subr.mxu0 0.0
        %405 = vmatpush2.msra.mxu0 0.0
        %406 = vmatprep.subr.mxu0 0.0
        %407 = vmatpush2.msra.mxu0 0.0
        %408 = vmatprep.subr.mxu0 0.0
        %409 = vmatpush2.msra.mxu0 0.0
        %410 = vmatprep.subr.mxu0 0.0
        %411 = vmatpush2.msra.mxu0 0.0
        %412 = vmatprep.subr.mxu0 0.0
        %413 = vmatpush2.msra.mxu0 0.0
        %414 = vmatprep.subr.mxu0 0.0
        %415 = vmatpush2.msra.mxu0 0.0
        %416 = vmatprep.subr.mxu0 0.0
        %417 = vmatpush2.msra.mxu0 0.0
        %418 = vmatprep.subr.mxu0 0.0
        %419 = vmatpush2.msra.mxu0 0.0
        %420 = vmatprep.mubr.f32.mxu0 0.0
        %421 = vmatmul.mubr.f32.gmra.mxu0 %v333
        %v422 = vpop.f32.mrf.mxu0
        %v423 = vadd.f32 0.0, %v422
        %v424 = vpop.f32.mrf.mxu0
        %425 = vmatprep.mubr.f32.mxu0 0.0
        %426 = vmatmul.mubr.f32.gmra.mxu0 %v336
        %v427 = vpop.f32.mrf.mxu0
        %v428 = vadd.f32 0.0, %v427
        %v429 = vpop.f32.mrf.mxu0
        %430 = vmatprep.mubr.f32.mxu0 0.0
        %431 = vmatmul.mubr.f32.gmra.mxu0 %v339
        %v432 = vpop.f32.mrf.mxu0
        %v433 = vadd.f32 0.0, %v432
        %v434 = vpop.f32.mrf.mxu0
        %435 = vmatprep.mubr.f32.mxu0 0.0
        %436 = vmatmul.mubr.f32.gmra.mxu0 %v342
        %v437 = vpop.f32.mrf.mxu0
        %v438 = vadd.f32 0.0, %v437
        %v439 = vpop.f32.mrf.mxu0
        %440 = vmatprep.mubr.f32.mxu0 0.0
        %441 = vmatmul.mubr.f32.gmra.mxu0 %v345
        %v442 = vpop.f32.mrf.mxu0
        %v443 = vadd.f32 0.0, %v442
        %v444 = vpop.f32.mrf.mxu0
        %445 = vmatprep.mubr.f32.mxu0 0.0
        %446 = vmatmul.mubr.f32.gmra.mxu0 %v348
        %v447 = vpop.f32.mrf.mxu0
        %v448 = vadd.f32 0.0, %v447
        %v449 = vpop.f32.mrf.mxu0
        %450 = vmatprep.mubr.f32.mxu0 0.0
        %451 = vmatmul.mubr.f32.gmra.mxu0 %v351
        %v452 = vpop.f32.mrf.mxu0
        %v453 = vadd.f32 0.0, %v452
        %v454 = vpop.f32.mrf.mxu0
        %455 = vmatprep.mubr.f32.mxu0 0.0
        %456 = vmatmul.mubr.f32.gmra.mxu0 %v354
        %v457 = vpop.f32.mrf.mxu0
        %v458 = vadd.f32 0.0, %v457
        %v459 = vpop.f32.mrf.mxu0
        %460 = vdwg.mxu0
        %v461 = vld [vmem:[%s3] sm:$0x3]
        %v462 = vlaneseq
        %v463 = vshrl.u32 %v462, 7
        %v464 = vsub.s32 1, %v463
        %v465 = vrot.slane %v461, %v464
        %v466 = vmul.f32 %v423, %v465
        %v467 = vmul.f32 %v428, %v465
        %v468 = vmul.f32 %v433, %v465
        %v469 = vmul.f32 %v438, %v465
        %v470 = vmul.f32 %v443, %v465
        %v471 = vmul.f32 %v448, %v465
        %v472 = vmul.f32 %v453, %v465
        %v473 = vmul.f32 %v458, %v465
        %v474 = vrot.slane %v423, 7
        %v475 = vrot.slane %v428, 7
        %v476 = vrot.slane %v433, 7
        %v477 = vrot.slane %v438, 7
        %v478 = vrot.slane %v443, 7
        %v479 = vrot.slane %v448, 7
        %v480 = vrot.slane %v453, 7
        %v481 = vrot.slane %v458, 7
        %v482 = vlaneseq
        %v483 = vshrl.u32 %v482, 7
        %vm484 = vcmp.lt.s32.totalorder %v483, 1
        %v485 = vsel %vm484, %v480, %v481
        %v486 = vsel %vm484, %v479, %v480
        %v487 = vsel %vm484, %v478, %v479
        %v488 = vsel %vm484, %v477, %v478
        %v489 = vsel %vm484, %v476, %v477
        %v490 = vsel %vm484, %v475, %v476
        %v491 = vsel %vm484, %v474, %v475
        %v492 = vsel %vm484, %v481, %v474
        %vm493 = vcmp.ge.s32.totalorder %v207, 1
        %vm494 = vcmp.ge.s32.totalorder %v208, 1
        %vm495 = vcmp.ge.s32.totalorder %v209, 1
        %vm496 = vcmp.ge.s32.totalorder %v210, 1
        %vm497 = vcmp.ge.s32.totalorder %v211, 1
        %vm498 = vcmp.ge.s32.totalorder %v212, 1
        %vm499 = vcmp.ge.s32.totalorder %v213, 1
        %vm500 = vcmp.ge.s32.totalorder %v214, 1
        %v501 = vsel %vm493, 1, 0
        %v502 = vsel %vm494, 1, 0
        %v503 = vsel %vm495, 1, 0
        %v504 = vsel %vm496, 1, 0
        %v505 = vsel %vm497, 1, 0
        %v506 = vsel %vm498, 1, 0
        %v507 = vsel %vm499, 1, 0
        %v508 = vsel %vm500, 1, 0
        %509 = vset.pattern.permute.xlu0 0
        %510 = vperm.xlu0 %509, %v501
        %v511 = vpop.permute.xlu0 %510
        %512 = vset.pattern.permute.xlu0 0
        %513 = vperm.xlu0 %512, %v502
        %v514 = vpop.permute.xlu0 %513
        %515 = vset.pattern.permute.xlu0 0
        %516 = vperm.xlu0 %515, %v503
        %v517 = vpop.permute.xlu0 %516
        %518 = vset.pattern.permute.xlu0 0
        %519 = vperm.xlu0 %518, %v504
        %v520 = vpop.permute.xlu0 %519
        %521 = vset.pattern.permute.xlu0 0
        %522 = vperm.xlu0 %521, %v505
        %v523 = vpop.permute.xlu0 %522
        %524 = vset.pattern.permute.xlu0 0
        %525 = vperm.xlu0 %524, %v506
        %v526 = vpop.permute.xlu0 %525
        %527 = vset.pattern.permute.xlu0 0
        %528 = vperm.xlu0 %527, %v507
        %v529 = vpop.permute.xlu0 %528
        %530 = vset.pattern.permute.xlu0 0
        %531 = vperm.xlu0 %530, %v508
        %v532 = vpop.permute.xlu0 %531
        %vm533 = vcmp.eq.s32.totalorder %v511, 1
        %vm534 = vcmp.eq.s32.totalorder %v514, 1
        %vm535 = vcmp.eq.s32.totalorder %v517, 1
        %vm536 = vcmp.eq.s32.totalorder %v520, 1
        %vm537 = vcmp.eq.s32.totalorder %v523, 1
        %vm538 = vcmp.eq.s32.totalorder %v526, 1
        %vm539 = vcmp.eq.s32.totalorder %v529, 1
        %vm540 = vcmp.eq.s32.totalorder %v532, 1
        %v541 = vsel %vm533, %v492, 0.0
        %v542 = vsel %vm534, %v491, 0.0
        %v543 = vsel %vm535, %v490, 0.0
        %v544 = vsel %vm536, %v489, 0.0
        %v545 = vsel %vm537, %v488, 0.0
        %v546 = vsel %vm538, %v487, 0.0
        %v547 = vsel %vm539, %v486, 0.0
        %v548 = vsel %vm540, %v485, 0.0
        %v549 = vlaneseq
        %v550 = vshrl.u32 %v549, 7
        %v551 = vsub.s32 0, %v550
        %v552 = vrot.slane %v461, %v551
        %v553 = vmul.f32 %v541, %v552
        %v554 = vmul.f32 %v542, %v552
        %v555 = vmul.f32 %v543, %v552
        %v556 = vmul.f32 %v544, %v552
        %v557 = vmul.f32 %v545, %v552
        %v558 = vmul.f32 %v546, %v552
        %v559 = vmul.f32 %v547, %v552
        %v560 = vmul.f32 %v548, %v552
        %v561 = vadd.f32 %v466, %v553
        %v562 = vadd.f32 %v467, %v554
        %v563 = vadd.f32 %v468, %v555
        %v564 = vadd.f32 %v469, %v556
        %v565 = vadd.f32 %v470, %v557
        %v566 = vadd.f32 %v471, %v558
        %v567 = vadd.f32 %v472, %v559
        %v568 = vadd.f32 %v473, %v560
        %v569 = vmax.f32 %v561, 0.0
        %v570 = vmax.f32 %v562, 0.0
        %v571 = vmax.f32 %v563, 0.0
        %v572 = vmax.f32 %v564, 0.0
        %v573 = vmax.f32 %v565, 0.0
        %v574 = vmax.f32 %v566, 0.0
        %v575 = vmax.f32 %v567, 0.0
        %v576 = vmax.f32 %v568, 0.0
        %577 = vst [vmem:[%s191] sm:$0xff] %v569
        %578 = vst [vmem:[%s191 + $0x8] sm:$0xff] %v570
        %579 = vst [vmem:[%s191 + $0x10] sm:$0xff] %v571
        %580 = vst [vmem:[%s191 + $0x18] sm:$0xff] %v572
        %581 = vst [vmem:[%s191 + $0x20] sm:$0xff] %v573
        %582 = vst [vmem:[%s191 + $0x28] sm:$0xff] %v574
        %583 = vst [vmem:[%s191 + $0x30] sm:$0xff] %v575
        %584 = vst [vmem:[%s191 + $0x38] sm:$0xff] %v576
        %s585 = sand.u32 %s115, 1
        %s586 = scalar_lea.sflag [#allocation3], %s585
        %s587 = sand.u32 %s115, 1
        %s588 = smul.addr %s587, 64
        %s589 = scalar_lea.vmem [#allocation2], %s588
        // Predicated region
        $region37: #{tpu_custom_call.1} parent=35 // pred_check
          %p590 = pneg %p125
        $region38: #{tpu_custom_call.1} parent=35 // pred_check_branch
          %592 = sbr.rel (%p590) target = $region40
        $region39: #{tpu_custom_call.1} parent=35 // pred_region
          %s593 = smul.u32 8, %s18
          %s595 = ssub.s32 1024, 1024
          %596 = vsyncadd %s586, %s595
          %s597 = smul.addr %s593, 128
          %s598 = scalar_lea.hbm %s4, %s597
          %s599 = sshll.u32 %s589, 4
          %s600 = int_to_ptr.vmem [resolvable:$true] %s599
          %605 = dma.vmem_to_hbm [thread:$0]  %s600, 1024, %s598, %s586, 128, 128, 8
        $region40: #{tpu_custom_call.1} parent=35 // pred_fallthru
          _
      $region36: #{tpu_custom_call.1} parent=5 // pred_fallthru
        _
      %p606 = scmp.le.s32.totalorder 2, %s13
      // Predicated region
      $region41: #{tpu_custom_call.1} parent=5 // pred_check
        %p607 = pneg %p606
      $region42: #{tpu_custom_call.1} parent=5 // pred_check_branch
        %609 = sbr.rel (%p607) target = $region44
      $region43: #{tpu_custom_call.1} parent=5 // pred_region
        %s610 = ssub.s32 %s13, 2
        // Predicated region
        $region45: #{tpu_custom_call.1} parent=43 // pred_check
          %p611 = pneg %p131
        $region46: #{tpu_custom_call.1} parent=43 // pred_check_branch
          %613 = sbr.rel (%p611) target = $region48
        $region47: #{tpu_custom_call.1} parent=43 // pred_region
          %s614 = sand.u32 %s116, 1
          %s615 = scalar_lea.sflag [#allocation3], %s614
          %s616 = sand.u32 %s116, 1
          %s617 = smul.addr %s616, 64
          %s618 = scalar_lea.vmem [#allocation2], %s617
          %619 = dma.done %s615, 1024
        $region48: #{tpu_custom_call.1} parent=43 // pred_fallthru
          _
      $region44: #{tpu_custom_call.1} parent=5 // pred_fallthru
        _
    $region6: #{tpu_custom_call.1} parent=1 // loop_footer
      %s17 = sadd.s32 1, %s13
    $region7: #{tpu_custom_call.1} parent=1 // loop_footer_branch
      %12 = sbr.rel target = $region3
    $region8: #{tpu_custom_call.1} parent=1 // loop_exit
      _
    %620 = vsyncpa [#allocation3], 1
    %s621 = scalar_lea.sflag [#allocation3], 1
    %622 = vsyncpa %s621, 1

</llo_original>
